<compile_context>
chip_gen: v6e
topology: v6e:2x2x1
jax: 0.10.0
libtpu: 0.0.40
codegen_flags: <defaults>
</compile_context>

<pallas_src>
import functools
import math

import jax
import jax.numpy as jnp
from jax.experimental import pallas as pl
from jax.experimental.pallas import tpu as pltpu


# --------------------------------------------------------------------------- #
# Kernel
# --------------------------------------------------------------------------- #
def _fused_bce_kernel(target_ref, *refs, level_meta):
    """Fused stable BCE-with-logits over all levels + per-level spatial mean + sum.

    Args:
      target_ref: (1,) f32 SMEM ref holding the BCE target (alpha or 0).
      *refs:      one VMEM ref per level (each (rows_tile, cols_i)), then the
                  output ref (rows_tile, out_cols), all for the current batch tile.
      level_meta: static tuple of (do_reduce, inv_n) per level.
    """
    out_ref = refs[-1]
    level_refs = refs[:-1]
    t = target_ref[0]

    acc = None
    for ref, (do_reduce, inv_n) in zip(level_refs, level_meta):
        x = ref[...].astype(jnp.float32)
        # Numerically stable BCEWithLogits: max(x,0) - x*t + log1p(exp(-|x|))
        loss = jnp.maximum(x, 0.0) - x * t + jnp.log1p(jnp.exp(-jnp.abs(x)))
        if do_reduce:
            # mean over the flattened spatial axis, finalized as sum * (1/HW)
            contrib = jnp.sum(loss, axis=-1, keepdims=True) * inv_n   # (rows, 1)
        else:
            contrib = loss                                            # (rows, C)
        # broadcasts exactly like PyTorch `loss +=`
        acc = contrib if acc is None else acc + contrib
    out_ref[...] = jnp.broadcast_to(acc, out_ref.shape)


# --------------------------------------------------------------------------- #
# Wrapper helpers
# --------------------------------------------------------------------------- #
def _prep_level(x):
    """Returns (x2d, do_reduce, inv_n, contribution_shape) for one level."""
    x = jnp.asarray(x)                     # keep native dtype; cast in-kernel
    if x.ndim > 2:
        # PyTorch: loss.mean([1, 2]).reshape(-1, 1)
        if x.ndim > 3:
            # move the reduced dims (1, 2) to the end; kept dims flatten to rows
            perm = (0,) + tuple(range(3, x.ndim)) + (1, 2)
            x = jnp.transpose(x, perm)     # extra HBM pass; see TODO above
        hw = x.shape[-2] * x.shape[-1]
        rows = math.prod(x.shape[:-2])
        x2d = x.reshape(rows, hw)          # lane-dense: H*W on the 128-lane axis
        return x2d, True, 1.0 / float(hw), (rows, 1)
    if x.ndim == 2:
        return x, False, 1.0, x.shape
    # 0-D / 1-D level: lift to 2-D; broadcasting vs. other levels is unchanged.
    x2d = x.reshape(1, -1)
    return x2d, False, 1.0, x2d.shape


def _chip_params():
    """Per-generation (budget for double-buffered tiles, scoped-VMEM limit, prefer>=2 steps)."""
    budget = 24 << 20          # safe on every generation (v7x: 64 MiB/TC physical)
    limit = 48 << 20
    prefer_multi = False
    try:
        cap = int(pltpu.get_tpu_info().vmem_capacity_bytes)
        if cap >= (100 << 20):          # v5e / v6e: 128 MiB per TensorCore
            budget = 40 << 20
            limit = 96 << 20
            prefer_multi = False
        else:                           # v7x: 64 MiB per TC, 2 TCs -> keep >=2 parallel steps
            budget = 24 << 20
            limit = 48 << 20
            prefer_multi = True
    except Exception:
        pass
    return budget, limit, prefer_multi


def _pick_batch_tile(B, bytes_per_row, budget, sublane, prefer_multi):
    """Largest sublane-aligned divisor of B whose double-buffered footprint fits."""
    aligned = [d for d in range(1, B + 1) if B % d == 0 and d % sublane == 0]

    def fits(d):
        return 2 * d * bytes_per_row <= budget

    if prefer_multi:
        # v7x: keep at least 2 "parallel" steps so both TensorCores get work.
        for d in sorted((d for d in aligned if d <= B // 2), reverse=True):
            if fits(d):
                return d
    for d in sorted(aligned, reverse=True):
        if fits(d):
            return d
    if aligned:
        return min(aligned)     # budget heuristic exceeded; smallest aligned tile
    return B                    # B not sublane-aligned: single full block (grid=(1,))


# --------------------------------------------------------------------------- #
# Public entry point
# --------------------------------------------------------------------------- #
def multilevel_loss_forward(inputs, alpha=1.0, for_real=True, for_G=False):
    """Pallas port of multilevel_loss.forward. `inputs` is a list of arrays."""
    if for_G:
        for_real = True
    target_val = float(alpha) * 1.0 if for_real else 0.0
    # Runtime SMEM scalar -> one compiled kernel serves real / fake / G branches.
    target = jnp.full((1,), target_val, dtype=jnp.float32)

    prepped = [_prep_level(x) for x in inputs]
    xs = [p[0] for p in prepped]
    level_meta = tuple((p[1], p[2]) for p in prepped)
    out_shp = jnp.broadcast_shapes(*(p[3] for p in prepped))

    B = out_shp[0]
    rows_align = all(x.shape[0] == B for x in xs)

    budget, vmem_limit, prefer_multi = _chip_params()

    # Advisory cost for XLA's scheduler around this custom call.
    n_elems = sum(int(x.size) for x in xs)
    bytes_accessed = (sum(int(x.size) * x.dtype.itemsize for x in xs)
                      + math.prod(out_shp) * 4 + 4)
    cost = pl.CostEstimate(flops=6 * n_elems,
                           transcendentals=2 * n_elems,
                           bytes_accessed=bytes_accessed)

    if rows_align:
        # Batch-tiled grid: pipelined DMA, output block written exactly once.
        bytes_per_row = (sum(x.dtype.itemsize * x.shape[-1] for x in xs)
                         + 4 * out_shp[1])
        # Sublane alignment follows the narrowest dtype (8 f32 / 16 bf16 / 32 int8).
        sublane = max(8, max(32 // x.dtype.itemsize for x in xs))
        bt = _pick_batch_tile(B, bytes_per_row, budget, sublane, prefer_multi)
        grid = (B // bt,)
        in_specs = [pl.BlockSpec(memory_space=pltpu.MemorySpace.SMEM)]   # target
        in_specs += [pl.BlockSpec((bt, x.shape[1]), lambda g: (g, 0)) for x in xs]
        out_spec = pl.BlockSpec((bt, out_shp[1]), lambda g: (g, 0))
        dim_sem = ("parallel",)
    else:
        # Mismatched leading dims across levels (rare): single fused full block.
        grid = (1,)
        in_specs = [pl.BlockSpec(memory_space=pltpu.MemorySpace.SMEM)]
        in_specs += [pl.BlockSpec(x.shape, lambda g: (0, 0)) for x in xs]
        out_spec = pl.BlockSpec(out_shp, lambda g: (0, 0))
        dim_sem = ("arbitrary",)

    kern = functools.partial(_fused_bce_kernel, level_meta=level_meta)
    return pl.pallas_call(
        kern,
        out_shape=jax.ShapeDtypeStruct(out_shp, jnp.float32),
        grid=grid,
        in_specs=in_specs,
        out_specs=out_spec,
        compiler_params=pltpu.CompilerParams(
            dimension_semantics=dim_sem,
            vmem_limit_bytes=vmem_limit),
        cost_estimate=cost,
    )(target, *xs)


# --------------------------------------------------------------------------- #
# Pure-JAX reference (verification only)
# --------------------------------------------------------------------------- #
def _reference(inputs, alpha=1.0, for_real=True, for_G=False):
    if for_G:
        for_real = True
    target = alpha * 1.0 if for_real else 0.0
    loss = 0.0
    for each in inputs:
        x = jnp.asarray(each, jnp.float32)
        l = jnp.maximum(x, 0.0) - x * target + jnp.log1p(jnp.exp(-jnp.abs(x)))
        if l.ndim > 2:
            l = jnp.mean(l, axis=(1, 2)).reshape(-1, 1)
        loss = loss + l
    return loss


if __name__ == "__main__":
    key = jax.random.PRNGKey(0)
    k1, k2, k3, k4, k5, k6 = jax.random.split(key, 6)

    # Case 1: small multi-level discriminator logits: two spatial levels (one
    # bf16 to exercise the in-kernel cast) plus a vector level that broadcasts.
    inputs = [
        jax.random.normal(k1, (2, 16, 16), dtype=jnp.float32),
        jax.random.normal(k2, (2, 8, 8), dtype=jnp.float32).astype(jnp.bfloat16),
        jax.random.normal(k3, (2, 4), dtype=jnp.float32),
    ]

    out_real = multilevel_loss_forward(inputs, alpha=1.0, for_real=True)
    out_fake = multilevel_loss_forward(inputs, alpha=1.0, for_real=False)
    out_G = multilevel_loss_forward(inputs, alpha=1.0, for_real=False, for_G=True)
    jax.block_until_ready((out_real, out_fake, out_G))

    ref_real = _reference(inputs, alpha=1.0, for_real=True)
    ref_fake = _reference(inputs, alpha=1.0, for_real=False)
    ref_G = _reference(inputs, alpha=1.0, for_real=False, for_G=True)

    assert out_real.shape == ref_real.shape, "shape mismatch (real)"
    assert jnp.allclose(out_real, ref_real, atol=1e-5), "real-branch mismatch"
    assert jnp.allclose(out_fake, ref_fake, atol=1e-5), "fake-branch mismatch"
    assert jnp.allclose(out_G, ref_G, atol=1e-5), "G-branch mismatch"

    # Case 2: larger batch, exercises the sublane-aligned batch-tiled path.
    inputs16 = [
        jax.random.normal(k4, (16, 16, 16), dtype=jnp.float32),
        jax.random.normal(k5, (16, 8, 8), dtype=jnp.float32).astype(jnp.bfloat16),
        jax.random.normal(k6, (16, 4), dtype=jnp.float32),
    ]
    out16 = multilevel_loss_forward(inputs16, alpha=0.5, for_real=False)
    jax.block_until_ready(out16)
    ref16 = _reference(inputs16, alpha=0.5, for_real=False)
    assert out16.shape == ref16.shape, "shape mismatch (batch16)"
    assert jnp.allclose(out16, ref16, atol=1e-5), "batch16 mismatch"

    print("KERNEL_OK")
</pallas_src>

<mosaic_0001>
module attributes {stable_mosaic.version = 11 : i64} {
  func.func @_fused_bce_kernel(%arg0: i32, %arg1: memref<1xf32, #tpu.memory_space<smem>>, %arg2: memref<2x256xf32, #tpu.memory_space<vmem>>, %arg3: memref<2x64xbf16, #tpu.memory_space<vmem>>, %arg4: memref<2x4xf32, #tpu.memory_space<vmem>>, %arg5: memref<2x4xf32, #tpu.memory_space<vmem>>) attributes {dimension_semantics = [#tpu.dimension_semantics<parallel>], iteration_bounds = array<i64: 1>, scalar_prefetch = 0 : i64, scratch_operands = 0 : i64, tpu.core_type = #tpu.core_type<tc>, window_params = [{transform_indices = @transform_0, window_bounds = array<i64: 1>}, {transform_indices = @transform_1, window_bounds = array<i64: 2, 256>}, {transform_indices = @transform_2, window_bounds = array<i64: 2, 64>}, {transform_indices = @transform_3, window_bounds = array<i64: 2, 4>}, {transform_indices = @transform_4, window_bounds = array<i64: 2, 4>}]} {
    %c0 = arith.constant 0 : index
    %0 = memref.load %arg1[%c0] : memref<1xf32, #tpu.memory_space<smem>>
    %c0_0 = arith.constant 0 : index
    %c0_1 = arith.constant 0 : index
    %1 = vector.load %arg2[%c0_0, %c0_1] : memref<2x256xf32, #tpu.memory_space<vmem>>, vector<2x256xf32>
    %cst = arith.constant 0.000000e+00 : f32
    %2 = vector.broadcast %cst : f32 to vector<2x256xf32>
    %3 = arith.maximumf %1, %2 : vector<2x256xf32>
    %4 = vector.broadcast %0 : f32 to vector<2x256xf32>
    %5 = arith.mulf %1, %4 : vector<2x256xf32>
    %6 = arith.subf %3, %5 : vector<2x256xf32>
    %7 = math.absf %1 : vector<2x256xf32>
    %cst_2 = arith.constant 0.000000e+00 : f32
    %8 = vector.broadcast %cst_2 : f32 to vector<2x256xf32>
    %9 = arith.subf %8, %7 : vector<2x256xf32>
    %10 = math.exp %9 : vector<2x256xf32>
    %11 = math.log1p %10 : vector<2x256xf32>
    %12 = arith.addf %6, %11 : vector<2x256xf32>
    %cst_3 = arith.constant dense<0.000000e+00> : vector<2xf32>
    %13 = vector.multi_reduction <add>, %12, %cst_3 [1] : vector<2x256xf32> to vector<2xf32>
    %14 = vector.shape_cast %13 : vector<2xf32> to vector<2x1xf32>
    %cst_4 = arith.constant 3.906250e-03 : f32
    %15 = vector.broadcast %cst_4 : f32 to vector<2x1xf32>
    %16 = arith.mulf %14, %15 : vector<2x1xf32>
    %c0_5 = arith.constant 0 : index
    %c0_6 = arith.constant 0 : index
    %17 = vector.load %arg3[%c0_5, %c0_6] : memref<2x64xbf16, #tpu.memory_space<vmem>>, vector<2x64xbf16>
    %18 = arith.extf %17 : vector<2x64xbf16> to vector<2x64xf32>
    %cst_7 = arith.constant 0.000000e+00 : f32
    %19 = vector.broadcast %cst_7 : f32 to vector<2x64xf32>
    %20 = arith.maximumf %18, %19 : vector<2x64xf32>
    %21 = vector.broadcast %0 : f32 to vector<2x64xf32>
    %22 = arith.mulf %18, %21 : vector<2x64xf32>
    %23 = arith.subf %20, %22 : vector<2x64xf32>
    %24 = math.absf %18 : vector<2x64xf32>
    %cst_8 = arith.constant 0.000000e+00 : f32
    %25 = vector.broadcast %cst_8 : f32 to vector<2x64xf32>
    %26 = arith.subf %25, %24 : vector<2x64xf32>
    %27 = math.exp %26 : vector<2x64xf32>
    %28 = math.log1p %27 : vector<2x64xf32>
    %29 = arith.addf %23, %28 : vector<2x64xf32>
    %cst_9 = arith.constant dense<0.000000e+00> : vector<2xf32>
    %30 = vector.multi_reduction <add>, %29, %cst_9 [1] : vector<2x64xf32> to vector<2xf32>
    %31 = vector.shape_cast %30 : vector<2xf32> to vector<2x1xf32>
    %cst_10 = arith.constant 1.562500e-02 : f32
    %32 = vector.broadcast %cst_10 : f32 to vector<2x1xf32>
    %33 = arith.mulf %31, %32 : vector<2x1xf32>
    %34 = arith.addf %16, %33 : vector<2x1xf32>
    %c0_11 = arith.constant 0 : index
    %c0_12 = arith.constant 0 : index
    %35 = vector.load %arg4[%c0_11, %c0_12] : memref<2x4xf32, #tpu.memory_space<vmem>>, vector<2x4xf32>
    %cst_13 = arith.constant 0.000000e+00 : f32
    %36 = vector.broadcast %cst_13 : f32 to vector<2x4xf32>
    %37 = arith.maximumf %35, %36 : vector<2x4xf32>
    %38 = vector.broadcast %0 : f32 to vector<2x4xf32>
    %39 = arith.mulf %35, %38 : vector<2x4xf32>
    %40 = arith.subf %37, %39 : vector<2x4xf32>
    %41 = math.absf %35 : vector<2x4xf32>
    %cst_14 = arith.constant 0.000000e+00 : f32
    %42 = vector.broadcast %cst_14 : f32 to vector<2x4xf32>
    %43 = arith.subf %42, %41 : vector<2x4xf32>
    %44 = math.exp %43 : vector<2x4xf32>
    %45 = math.log1p %44 : vector<2x4xf32>
    %46 = arith.addf %40, %45 : vector<2x4xf32>
    %47 = vector.broadcast %34 : vector<2x1xf32> to vector<2x4xf32>
    %48 = arith.addf %47, %46 : vector<2x4xf32>
    %c0_15 = arith.constant 0 : index
    %c0_16 = arith.constant 0 : index
    %49 = vector.load %arg5[%c0_15, %c0_16] : memref<2x4xf32, #tpu.memory_space<vmem>>, vector<2x4xf32>
    tpu.vector_store %arg5[%c0_15, %c0_16], %48 {strides = array<i32>} : memref<2x4xf32, #tpu.memory_space<vmem>>, vector<2x4xf32>,
    return
  }
  func.func @transform_0(%arg0: i32) -> i32 {
    %c0_i32 = arith.constant 0 : i32
    %c0_i32_0 = arith.constant 0 : i32
    return %c0_i32 : i32
  }
  func.func @transform_1(%arg0: i32) -> (i32, i32) {
    %c0_i32 = arith.constant 0 : i32
    %c0_i32_0 = arith.constant 0 : i32
    return %arg0, %c0_i32 : i32, i32
  }
  func.func @transform_2(%arg0: i32) -> (i32, i32) {
    %c0_i32 = arith.constant 0 : i32
    %c0_i32_0 = arith.constant 0 : i32
    return %arg0, %c0_i32 : i32, i32
  }
  func.func @transform_3(%arg0: i32) -> (i32, i32) {
    %c0_i32 = arith.constant 0 : i32
    %c0_i32_0 = arith.constant 0 : i32
    return %arg0, %c0_i32 : i32, i32
  }
  func.func @transform_4(%arg0: i32) -> (i32, i32) {
    %c0_i32 = arith.constant 0 : i32
    %c0_i32_0 = arith.constant 0 : i32
    return %arg0, %c0_i32 : i32, i32
  }
}

</mosaic_0001>

<llo_original>
// kernel: tpu_custom_call.1
$region0: #{tpu_custom_call.1}
  #allocation0 [shape = 'u32[]', space=smem, size = 0x4, offset = 0x4, fixed_abs, tag = 'smem constant byte address 0x4 - core index']
  #allocation1 [shape = 'u32[144,128]{1,0:T(1,128)}', space=vmem, size = 0x12000, scoped, tag = 'internal scratch']
  #allocation2 [shape = 'f32[1]{0:T(128)S(6)}', space=smem, size = 0x200, scoped, tag = 'scoped memory for tpu_custom_call.1']
  %s0 = inlined_call_operand.<no memory space> [shape: f32[1], index: 0, kind: input, shape index: {}]
  %s1 = inlined_call_operand.hbm [shape: f32[2,256], index: 1, kind: input, shape index: {}]
  %s2 = inlined_call_operand.vmem [shape: bf16[2,64], index: 2, kind: input, shape index: {}]
  %s3 = inlined_call_operand.vmem [shape: f32[2,4], index: 3, kind: input, shape index: {}]
  %s4 = inlined_call_operand.hbm [shape: f32[2,4], index: 4, kind: output, shape index: {}]
  %s5 = sld [smem:[#allocation0]]
  $region30: #{tpu_custom_call.1} parent=0
    _
  %s7 = ssub.s32 1, %s5
  %s8 = scalar_select 0, %s7, %s5
  %9 = sst [smem:[#allocation2]] %s0
  $region1: #{tpu_custom_call.1} parent=0
    #allocation3 [shape = 'u8[2048]{0}', space=vmem, size = 0x800, scoped, tag = 'input window, operand 1, single buffered']
    #allocation4 [shape = 's32[1]{0}', space=sflag, size = 0x4, scoped, tag = 'scoped memory for tpu_custom_call.1']
    #allocation5 [shape = 's32[1]{0}', space=sflag, size = 0x4, scoped, tag = 'scoped memory for tpu_custom_call.1']
    #allocation6 [shape = 'u8[1024]{0}', space=vmem, size = 0x400, scoped, tag = 'output window, operand 0, single buffered']
    %10 = vsyncpa [#allocation4], 0
    %11 = vsyncpa [#allocation5], 0
    // Predicated region
    $region2: #{tpu_custom_call.1} parent=1 // pred_check
      _
    $region3: #{tpu_custom_call.1} parent=1 // pred_check_branch
      %13 = sbr.rel (0) target = $region5
    $region4: #{tpu_custom_call.1} parent=1 // pred_region
      _
    $region5: #{tpu_custom_call.1} parent=1 // pred_fallthru
      _
    // Predicated region
    $region6: #{tpu_custom_call.1} parent=1 // pred_check
      _
    $region7: #{tpu_custom_call.1} parent=1 // pred_check_branch
      %15 = sbr.rel (0) target = $region9
    $region8: #{tpu_custom_call.1} parent=1 // pred_region
      %s17 = ssub.s32 64, 64
      %18 = vsyncadd [#allocation4], %s17
      %s20 = sshll.u32 [#allocation3], 4
      %s21 = int_to_ptr.vmem [resolvable:$true] %s20
      %23 = dma.hbm_to_vmem [thread:$0]  %s1, 64, %s21, [#allocation4]
    $region9: #{tpu_custom_call.1} parent=1 // pred_fallthru
      _
    // Predicated region
    $region10: #{tpu_custom_call.1} parent=1 // pred_check
      _
    $region11: #{tpu_custom_call.1} parent=1 // pred_check_branch
      %25 = sbr.rel (0) target = $region13
    $region12: #{tpu_custom_call.1} parent=1 // pred_region
      _
    $region13: #{tpu_custom_call.1} parent=1 // pred_fallthru
      _
    // Predicated region
    $region14: #{tpu_custom_call.1} parent=1 // pred_check
      _
    $region15: #{tpu_custom_call.1} parent=1 // pred_check_branch
      %27 = sbr.rel (0) target = $region17
    $region16: #{tpu_custom_call.1} parent=1 // pred_region
      _
    $region17: #{tpu_custom_call.1} parent=1 // pred_fallthru
      _
    // Predicated region
    $region18: #{tpu_custom_call.1} parent=1 // pred_check
      _
    $region19: #{tpu_custom_call.1} parent=1 // pred_check_branch
      %29 = sbr.rel (0) target = $region21
    $region20: #{tpu_custom_call.1} parent=1 // pred_region
      %30 = dma.done [#allocation4], 64
    $region21: #{tpu_custom_call.1} parent=1 // pred_fallthru
      _
    %s31 = sld [smem:[#allocation2]]
    %v32 = vld [vmem:[#allocation3] sm:$0xf]
    %v33 = vmax.f32 %v32, 0.0
    %v34 = vstv %s31
    %v35 = vmul.f32 %v32, %v34
    %v36 = vsub.f32 %v33, %v35
    %v37 = vand.u32 2147483647, %v32
    %v38 = vsub.f32 0.0, %v37
    %v39 = vmul.f32 %v38, 1.442695
    %v40 = vpow.pop %v39
    %v41 = vadd.f32 %v40, 1.0
    %v42 = vlog2.pop %v41
    %v43 = vmul.f32 %v42, 0.6931472
    %v44 = vmul.f32 -0.5, %v40
    %v45 = vadd.f32 %v44, 1.0
    %v46 = vmul.f32 %v45, %v40
    %v47 = vand.u32 2147483647, %v40
    %vm48 = vcmp.lt.f32.partialorder %v47, 0.0004427343
    %v49 = vsel %vm48, %v46, %v43
    %v50 = vadd.f32 %v36, %v49
    %v53 = vunpack.c.l.s4 1983009808
    %v54 = vunpack.c.0.s8 %v53
    %v55 = vlaneseq
    %v56 = vshrl.u32 %v55, 7
    %v57 = vsub.s32 %v54, %v56
    %v58 = vrot.slane %v50, %v57
    %v59 = vcombine.high %v58, %v58
    %vm62 = vcmask 1041408
    %v63 = vsel %vm62, %v58, 0.0
    %v64 = vsel %vm62, %v59, 0.0
    %v65 = vadd.f32 %v63, %v64
    %66 = vadd.xlane.f32.xlu0 %v65
    %v67 = vpop.xlane.xlu0 %66
    %v68 = vmul.f32 %v67, 0.00390625
    %v69 = vld [vmem:[%s2] sm:$0x1]
    %v70 = vunpack.c.l.bf16 %v69
    %v71 = vmax.f32 %v70, 0.0
    %v72 = vmul.f32 %v70, %v34
    %v73 = vsub.f32 %v71, %v72
    %v74 = vand.u32 2147483647, %v70
    %v75 = vsub.f32 0.0, %v74
    %v76 = vmul.f32 %v75, 1.442695
    %v77 = vpow.pop %v76
    %v78 = vadd.f32 %v77, 1.0
    %v79 = vlog2.pop %v78
    %v80 = vmul.f32 %v79, 0.6931472
    %v81 = vmul.f32 -0.5, %v77
    %v82 = vadd.f32 %v81, 1.0
    %v83 = vmul.f32 %v82, %v77
    %v84 = vand.u32 2147483647, %v77
    %vm85 = vcmp.lt.f32.partialorder %v84, 0.0004427343
    %v86 = vsel %vm85, %v83, %v80
    %v87 = vadd.f32 %v73, %v86
    %vm88 = vcmask 517120
    %v89 = vsel %vm88, %v87, 0.0
    %90 = vadd.xlane.f32.xlu0 %v89
    %v91 = vpop.xlane.xlu0 %90
    %v92 = vmul.f32 %v91, 0.015625
    %v93 = vadd.f32 %v68, %v92
    %v94 = vld [vmem:[%s3] sm:$0x3]
    %v95 = vmax.f32 %v94, 0.0
    %v96 = vmul.f32 %v94, %v34
    %v97 = vsub.f32 %v95, %v96
    %v98 = vand.u32 2147483647, %v94
    %v99 = vsub.f32 0.0, %v98
    %v100 = vmul.f32 %v99, 1.442695
    %v101 = vpow.pop %v100
    %v102 = vadd.f32 %v101, 1.0
    %v103 = vlog2.pop %v102
    %v104 = vmul.f32 %v103, 0.6931472
    %v105 = vmul.f32 -0.5, %v101
    %v106 = vadd.f32 %v105, 1.0
    %v107 = vmul.f32 %v106, %v101
    %v108 = vand.u32 2147483647, %v101
    %vm109 = vcmp.lt.f32.partialorder %v108, 0.0004427343
    %v110 = vsel %vm109, %v107, %v104
    %v111 = vadd.f32 %v97, %v110
    %v112 = vadd.f32 %v93, %v111
    %vm113 = vcmask 25600
    %114 = vst.msk [vmem:[#allocation6] sm:$0x3] %vm113, %v112
    // Predicated region
    $region22: #{tpu_custom_call.1} parent=1 // pred_check
      _
    $region23: #{tpu_custom_call.1} parent=1 // pred_check_branch
      %116 = sbr.rel (0) target = $region25
    $region24: #{tpu_custom_call.1} parent=1 // pred_region
      %s118 = ssub.s32 32, 32
      %119 = vsyncadd [#allocation5], %s118
      %s121 = sshll.u32 [#allocation6], 4
      %s122 = int_to_ptr.vmem [resolvable:$true] %s121
      %124 = dma.vmem_to_hbm [thread:$0]  %s122, 32, %s4, [#allocation5]
    $region25: #{tpu_custom_call.1} parent=1 // pred_fallthru
      _
    // Predicated region
    $region26: #{tpu_custom_call.1} parent=1 // pred_check
      _
    $region27: #{tpu_custom_call.1} parent=1 // pred_check_branch
      %126 = sbr.rel (0) target = $region29
    $region28: #{tpu_custom_call.1} parent=1 // pred_region
      %127 = dma.done [#allocation5], 32
    $region29: #{tpu_custom_call.1} parent=1 // pred_fallthru
      _
    %128 = vsyncpa [#allocation4], 1
    %129 = vsyncpa [#allocation5], 1

</llo_original>
